<compile_context>
chip_gen: v5e
topology: v5e:2x2
jax: 0.10.0
libtpu: 0.0.40
codegen_flags: <defaults>
</compile_context>

<pallas_src>
import math
import functools

import jax
import jax.numpy as jnp
from jax import lax
from jax.experimental import pallas as pl
from jax.experimental.pallas import tpu as pltpu


def _channel_attn_kernel(q_ref, k_ref, v_ref, o_ref, m_ref, l_ref, acc_ref, *, scale):
    """One (blk_b, d_head, S) query slab x one (blk_b, d_head, Tk) key/value chunk.

    Raw layout: q/k/v refs hold Q^T/K^T/V^T per slab (lane axis = channel axis,
    sublane axis = d_head).  Online softmax runs over the chunked key axis
    (grid axis 1, "arbitrary")."""
    t = pl.program_id(1)

    @pl.when(t == 0)
    def _init():
        m_ref[...] = jnp.full_like(m_ref, -jnp.inf)
        l_ref[...] = jnp.zeros_like(l_ref)
        acc_ref[...] = jnp.zeros_like(acc_ref)

    q = q_ref[...]                      # [B, d_head, S]
    k = k_ref[...]                      # [B, d_head, Tk]
    v = v_ref[...]                      # [B, d_head, Tk]

    # s_t[b, t, s] = sum_d k[b, d, t] * q[b, d, s]  ==  (Q K^T)^T.
    # Only the small [d_head, Tk] lhs is a "transposed" MXU operand; the big
    # [Tk, S] scores/probs tile stays untransposed through both matmuls.
    s_t = lax.dot_general(
        k, q,
        dimension_numbers=(((1,), (1,)), ((0,), (0,))),
        preferred_element_type=jnp.float32,
    )                                   # [B, Tk, S] f32

    m_prev = m_ref[...]                                       # [B, 1, S]
    m_new = jnp.maximum(m_prev, jnp.max(s_t, axis=1, keepdims=True))
    # 1/sqrt(d_head) is folded into the exp argument (valid since scale > 0).
    alpha = jnp.exp((m_prev - m_new) * scale)                 # [B, 1, S]
    p_t = jnp.exp((s_t - m_new) * scale)                      # [B, Tk, S] unnormalized

    l_ref[...] = alpha * l_ref[...] + jnp.sum(p_t, axis=1, keepdims=True)
    m_ref[...] = m_new

    # pv[b, d, s] = sum_t v[b, d, t] * p_t[b, t, s]  -- canonical MXU form for
    # both operands.  Probs are cast to v.dtype (bf16 inputs keep bf16 probs,
    # standard flash-attention tradeoff); accumulation stays f32.
    pv = lax.dot_general(
        v, p_t.astype(v.dtype),
        dimension_numbers=(((2,), (1,)), ((0,), (0,))),
        preferred_element_type=jnp.float32,
    )                                   # [B, d_head, S] f32
    acc_ref[...] = alpha * acc_ref[...] + pv

    @pl.when(t == pl.num_programs(1) - 1)
    def _finalize():
        # Deferred softmax normalization on the [d_head, S] output, with an
        # EXACT f32 reciprocal (the approx EUP reciprocal was the only accuracy
        # loss and an exact divide is free while memory-bound).
        inv_l = 1.0 / l_ref[...]
        o_ref[...] = (acc_ref[...] * inv_l).astype(o_ref.dtype)


def _vmem_limit_bytes():
    """Per-generation VMEM limit (128 MiB on v5e/v6e, 64 MiB on v7x), with
    ~25% headroom for Mosaic-internal scratch, capped at 100 MiB."""
    try:
        cap = int(pltpu.get_tpu_info().vmem_capacity_bytes)
    except Exception:
        cap = 64 * 1024 * 1024          # conservative fallback = smallest (v7x)
    return min(int(cap * 0.75), 100 * 1024 * 1024)


def _choose_tiling(b_total, d_head, s, itemsize, vmem_limit):
    """Pick (blk_b, tk): slabs per block and the key-chunk size.

    VMEM accounting (per review) charges the double-buffered q/k/v/o pipeline
    blocks, the f32 online-softmax scratch (m, l, acc), and the in-kernel f32
    intermediates (scores, probs, dtype-cast probs, pv / alpha*acc temps)."""
    budget = int(vmem_limit * 0.85)

    def per_b(tk):
        io = (2 * d_head * s * itemsize          # q block, double-buffered
              + 4 * d_head * tk * itemsize       # k + v blocks, double-buffered
              + 2 * d_head * s * itemsize)       # o block, double-buffered
        scratch = (d_head * s * 4                # f32 output accumulator
                   + 2 * 8 * s * 4)              # m, l (sublane-padded to 8)
        interm = (4 * tk * s * 4                 # s_t, p_t, exp temporaries (f32)
                  + tk * s * itemsize            # p_t cast to MXU input dtype
                  + 2 * d_head * s * 4)          # pv + alpha*acc temporaries
        return io + scratch + interm

    # Key-chunk size: the whole channel axis if one slab fits, otherwise the
    # largest 128-multiple divisor of S that fits (lane-dense + (8,128) rule).
    tk = s
    if per_b(s) > budget:
        cands = [c for c in range(128, s, 128) if s % c == 0]
        fitting = [c for c in cands if per_b(c) <= budget]
        if fitting:
            tk = max(fitting)
        elif cands:
            tk = min(cands)
        # TODO(synk): if S is huge with no 128-multiple divisor, also chunk the
        # query axis (extra grid level) instead of over-sizing the block.
    per_slab = per_b(tk)

    # Slabs per block: largest divisor of b_total that fits the budget, preferring
    # an even number of >= 4 parallel steps (>= 2 per v7x TensorCore so the DMA
    # pipeline always has something to overlap and the cores stay balanced).
    divs = [dv for dv in range(1, b_total + 1) if b_total % dv == 0]
    fitting = [dv for dv in divs if dv * per_slab <= budget] or [1]
    steps = lambda dv: b_total // dv
    for pred in ((lambda dv: steps(dv) >= 4 and steps(dv) % 2 == 0),
                 (lambda dv: steps(dv) >= 2 and steps(dv) % 2 == 0),
                 (lambda dv: steps(dv) >= 2),
                 (lambda dv: True)):
        ok = [dv for dv in fitting if pred(dv)]
        if ok:
            return max(ok), tk
    return 1, tk


@functools.partial(jax.jit, static_argnames=("d_head",))
def channel_attention(q, k, v, *, d_head=128):
    """q, k, v: [N, L, H, D] with L divisible by d_head. Returns [N, L, H, D].

    Fast path wants S = H*D to be a multiple of 128 (lane-dense stores and full
    MXU lane utilization); other S still run correctly."""
    n, l, h, d = q.shape
    assert l % d_head == 0, "L must be divisible by d_head"
    h1 = l // d_head
    s = h * d
    b_total = n * h1

    # Free reshape (no transpose, no HBM copy): [N, L, H, D] -> [N*h1, d_head, S].
    def raw(x):
        return x.reshape(b_total, d_head, s)

    qr, kr, vr = raw(q), raw(k), raw(v)

    vmem_limit = _vmem_limit_bytes()
    blk_b, tk = _choose_tiling(b_total, d_head, s, qr.dtype.itemsize, vmem_limit)
    grid = (b_total // blk_b, s // tk)     # (parallel slab blocks, key chunks)

    # Last two block dims are either full array dims or 128-multiples -> (8,128) ok.
    q_spec = pl.BlockSpec((blk_b, d_head, s), lambda b, t: (b, 0, 0))
    kv_spec = pl.BlockSpec((blk_b, d_head, tk), lambda b, t: (b, 0, t))
    o_spec = pl.BlockSpec((blk_b, d_head, s), lambda b, t: (b, 0, 0))

    flops = 4 * b_total * s * s * d_head                        # two matmuls
    transcendentals = b_total * s * (s + 2)                     # exp + reciprocal
    bytes_accessed = 4 * b_total * d_head * s * qr.dtype.itemsize

    out = pl.pallas_call(
        functools.partial(_channel_attn_kernel, scale=1.0 / math.sqrt(d_head)),
        out_shape=jax.ShapeDtypeStruct((b_total, d_head, s), q.dtype),
        grid_spec=pltpu.PrefetchScalarGridSpec(
            num_scalar_prefetch=0,
            grid=grid,
            in_specs=[q_spec, kv_spec, kv_spec],
            out_specs=o_spec,
            scratch_shapes=[
                pltpu.VMEM((blk_b, 1, s), jnp.float32),         # running max m
                pltpu.VMEM((blk_b, 1, s), jnp.float32),         # running denom l
                pltpu.VMEM((blk_b, d_head, s), jnp.float32),    # f32 out accumulator
            ],
        ),
        compiler_params=pltpu.CompilerParams(
            dimension_semantics=("parallel", "arbitrary"),
            vmem_limit_bytes=int(vmem_limit),
        ),
        cost_estimate=pl.CostEstimate(
            flops=flops,
            transcendentals=transcendentals,
            bytes_accessed=bytes_accessed,
        ),
    )(qr, kr, vr)

    # Free reshape back: [N*h1, d_head, S] -> [N, L, H, D].
    return out.reshape(n, l, h, d)


def _reference(q, k, v, d_head):
    """Pure-JAX transcription of the PyTorch module (explicit rearranges)."""
    n, l, h, d = q.shape
    h1 = l // d_head
    s = h * d

    def rearr(x):
        # 'n (h1 d1) h0 d0 -> n h1 (h0 d0) d1'
        return (x.reshape(n, h1, d_head, h, d)
                 .transpose(0, 1, 3, 4, 2)
                 .reshape(n, h1, s, d_head))

    qr, kr, vr = rearr(q), rearr(k), rearr(v)
    att = jnp.einsum("nhsd,nhtd->nhst", qr, kr) / math.sqrt(d_head)
    att = jax.nn.softmax(att, axis=-1)
    x = jnp.einsum("nhst,nhtd->nhsd", att, vr)
    # 'n h1 (h0 d0) d1 -> n (h1 d1) h0 d0'
    x = x.reshape(n, h1, h, d, d_head).transpose(0, 1, 4, 2, 3).reshape(n, l, h, d)
    return x


if __name__ == "__main__":
    d_head = 128            # module default
    # Small but lane-dense test shapes: S = H*D = 128 (perf review: keep the
    # lane axis a multiple of 128), h1 = 2 -> L = 256, and b_total = N*h1 = 4
    # parallel grid steps (even, >= 4 -> both v7x cores get 2 pipelined steps).
    N, H, D = 2, 4, 32
    h1 = 2
    L = h1 * d_head         # 256

    key = jax.random.PRNGKey(0)
    kq, kk, kv = jax.random.split(key, 3)
    q = jax.random.normal(kq, (N, L, H, D), dtype=jnp.float32)
    k = jax.random.normal(kk, (N, L, H, D), dtype=jnp.float32)
    v = jax.random.normal(kv, (N, L, H, D), dtype=jnp.float32)

    out = channel_attention(q, k, v, d_head=d_head)
    out = jax.block_until_ready(out)

    ref = _reference(q, k, v, d_head)
    assert out.shape == (N, L, H, D)
    # Softmax normalization is exact now (approx reciprocal removed); remaining
    # tolerance only covers MXU f32 matmul rounding vs the XLA einsum reference.
    assert jnp.allclose(out, ref, atol=2e-3, rtol=2e-3), "mismatch vs reference"

    print("KERNEL_OK")
</pallas_src>

<mosaic_0001>
module attributes {stable_mosaic.version = 11 : i64} {
  func.func @_channel_attn_kernel(%arg0: i32, %arg1: i32, %arg2: memref<1x128x128xf32, #tpu.memory_space<vmem>>, %arg3: memref<1x128x128xf32, #tpu.memory_space<vmem>>, %arg4: memref<1x128x128xf32, #tpu.memory_space<vmem>>, %arg5: memref<1x128x128xf32, #tpu.memory_space<vmem>>, %arg6: memref<1x1x128xf32, #tpu.memory_space<vmem>>, %arg7: memref<1x1x128xf32, #tpu.memory_space<vmem>>, %arg8: memref<1x128x128xf32, #tpu.memory_space<vmem>>) attributes {dimension_semantics = [#tpu.dimension_semantics<parallel>, #tpu.dimension_semantics<arbitrary>], iteration_bounds = array<i64: 4, 1>, scalar_prefetch = 0 : i64, scratch_operands = 3 : i64, tpu.core_type = #tpu.core_type<tc>, window_params = [{transform_indices = @transform_0, window_bounds = array<i64: 1, 128, 128>}, {transform_indices = @transform_1, window_bounds = array<i64: 1, 128, 128>}, {transform_indices = @transform_2, window_bounds = array<i64: 1, 128, 128>}, {transform_indices = @transform_3, window_bounds = array<i64: 1, 128, 128>}]} {
    %c0_i32 = arith.constant 0 : i32
    %0 = arith.cmpi eq, %arg1, %c0_i32 : i32
    %1 = arith.extui %0 : i1 to i32
    %c0_i32_0 = arith.constant 0 : i32
    %2 = arith.cmpi ne, %1, %c0_i32_0 : i32
    scf.if %2 {
      %cst_34 = arith.constant 0xFF800000 : f32
      %36 = vector.broadcast %cst_34 : f32 to vector<1x1x128xf32>
      %c0_35 = arith.constant 0 : index
      %c0_36 = arith.constant 0 : index
      %c0_37 = arith.constant 0 : index
      %37 = vector.load %arg6[%c0_35, %c0_36, %c0_37] : memref<1x1x128xf32, #tpu.memory_space<vmem>>, vector<1x1x128xf32>
      tpu.vector_store %arg6[%c0_35, %c0_36, %c0_37], %36 {strides = array<i32>} : memref<1x1x128xf32, #tpu.memory_space<vmem>>, vector<1x1x128xf32>,
      %cst_38 = arith.constant 0.000000e+00 : f32
      %38 = vector.broadcast %cst_38 : f32 to vector<1x1x128xf32>
      %c0_39 = arith.constant 0 : index
      %c0_40 = arith.constant 0 : index
      %c0_41 = arith.constant 0 : index
      %39 = vector.load %arg7[%c0_39, %c0_40, %c0_41] : memref<1x1x128xf32, #tpu.memory_space<vmem>>, vector<1x1x128xf32>
      tpu.vector_store %arg7[%c0_39, %c0_40, %c0_41], %38 {strides = array<i32>} : memref<1x1x128xf32, #tpu.memory_space<vmem>>, vector<1x1x128xf32>,
      %cst_42 = arith.constant 0.000000e+00 : f32
      %40 = vector.broadcast %cst_42 : f32 to vector<1x128x128xf32>
      %c0_43 = arith.constant 0 : index
      %c0_44 = arith.constant 0 : index
      %c0_45 = arith.constant 0 : index
      %41 = vector.load %arg8[%c0_43, %c0_44, %c0_45] : memref<1x128x128xf32, #tpu.memory_space<vmem>>, vector<1x128x128xf32>
      tpu.vector_store %arg8[%c0_43, %c0_44, %c0_45], %40 {strides = array<i32>} : memref<1x128x128xf32, #tpu.memory_space<vmem>>, vector<1x128x128xf32>,
    } else {
    }
    %c0 = arith.constant 0 : index
    %c0_1 = arith.constant 0 : index
    %c0_2 = arith.constant 0 : index
    %3 = vector.load %arg2[%c0, %c0_1, %c0_2] : memref<1x128x128xf32, #tpu.memory_space<vmem>>, vector<1x128x128xf32>
    %c0_3 = arith.constant 0 : index
    %c0_4 = arith.constant 0 : index
    %c0_5 = arith.constant 0 : index
    %4 = vector.load %arg3[%c0_3, %c0_4, %c0_5] : memref<1x128x128xf32, #tpu.memory_space<vmem>>, vector<1x128x128xf32>
    %c0_6 = arith.constant 0 : index
    %c0_7 = arith.constant 0 : index
    %c0_8 = arith.constant 0 : index
    %5 = vector.load %arg4[%c0_6, %c0_7, %c0_8] : memref<1x128x128xf32, #tpu.memory_space<vmem>>, vector<1x128x128xf32>
    %cst = arith.constant dense<0.000000e+00> : vector<1x128x128xf32>
    %6 = tpu.matmul %4, %3, %cst {dimension_numbers = #tpu.dot_dimension_numbers<[1], [1], [2], [2], [0, 0, 0, 2, 1, 2], [0], [0]>} : vector<1x128x128xf32>, vector<1x128x128xf32>, vector<1x128x128xf32> -> vector<1x128x128xf32>
    %c0_9 = arith.constant 0 : index
    %c0_10 = arith.constant 0 : index
    %c0_11 = arith.constant 0 : index
    %7 = vector.load %arg6[%c0_9, %c0_10, %c0_11] : memref<1x1x128xf32, #tpu.memory_space<vmem>>, vector<1x1x128xf32>
    %cst_12 = arith.constant dense<0xFF800000> : vector<1x128xf32>
    %8 = vector.multi_reduction <maximumf>, %6, %cst_12 [1] : vector<1x128x128xf32> to vector<1x128xf32>
    %9 = vector.shape_cast %8 : vector<1x128xf32> to vector<1x1x128xf32>
    %10 = arith.maximumf %7, %9 : vector<1x1x128xf32>
    %11 = arith.subf %7, %10 : vector<1x1x128xf32>
    %cst_13 = arith.constant 0.0883883461 : f32
    %12 = vector.broadcast %cst_13 : f32 to vector<1x1x128xf32>
    %13 = arith.mulf %11, %12 : vector<1x1x128xf32>
    %14 = math.exp %13 : vector<1x1x128xf32>
    %15 = vector.broadcast %10 : vector<1x1x128xf32> to vector<1x128x128xf32>
    %16 = arith.subf %6, %15 : vector<1x128x128xf32>
    %cst_14 = arith.constant 0.0883883461 : f32
    %17 = vector.broadcast %cst_14 : f32 to vector<1x128x128xf32>
    %18 = arith.mulf %16, %17 : vector<1x128x128xf32>
    %19 = math.exp %18 : vector<1x128x128xf32>
    %c0_15 = arith.constant 0 : index
    %c0_16 = arith.constant 0 : index
    %c0_17 = arith.constant 0 : index
    %20 = vector.load %arg7[%c0_15, %c0_16, %c0_17] : memref<1x1x128xf32, #tpu.memory_space<vmem>>, vector<1x1x128xf32>
    %21 = arith.mulf %14, %20 : vector<1x1x128xf32>
    %cst_18 = arith.constant dense<0.000000e+00> : vector<1x128xf32>
    %22 = vector.multi_reduction <add>, %19, %cst_18 [1] : vector<1x128x128xf32> to vector<1x128xf32>
    %23 = vector.shape_cast %22 : vector<1x128xf32> to vector<1x1x128xf32>
    %24 = arith.addf %21, %23 : vector<1x1x128xf32>
    %c0_19 = arith.constant 0 : index
    %c0_20 = arith.constant 0 : index
    %c0_21 = arith.constant 0 : index
    %25 = vector.load %arg7[%c0_19, %c0_20, %c0_21] : memref<1x1x128xf32, #tpu.memory_space<vmem>>, vector<1x1x128xf32>
    tpu.vector_store %arg7[%c0_19, %c0_20, %c0_21], %24 {strides = array<i32>} : memref<1x1x128xf32, #tpu.memory_space<vmem>>, vector<1x1x128xf32>,
    %c0_22 = arith.constant 0 : index
    %c0_23 = arith.constant 0 : index
    %c0_24 = arith.constant 0 : index
    %26 = vector.load %arg6[%c0_22, %c0_23, %c0_24] : memref<1x1x128xf32, #tpu.memory_space<vmem>>, vector<1x1x128xf32>
    tpu.vector_store %arg6[%c0_22, %c0_23, %c0_24], %10 {strides = array<i32>} : memref<1x1x128xf32, #tpu.memory_space<vmem>>, vector<1x1x128xf32>,
    %cst_25 = arith.constant dense<0.000000e+00> : vector<1x128x128xf32>
    %27 = tpu.matmul %5, %19, %cst_25 {dimension_numbers = #tpu.dot_dimension_numbers<[2], [1], [1], [2], [0, 0, 0, 1, 1, 2], [0], [0]>} : vector<1x128x128xf32>, vector<1x128x128xf32>, vector<1x128x128xf32> -> vector<1x128x128xf32>
    %c0_26 = arith.constant 0 : index
    %c0_27 = arith.constant 0 : index
    %c0_28 = arith.constant 0 : index
    %28 = vector.load %arg8[%c0_26, %c0_27, %c0_28] : memref<1x128x128xf32, #tpu.memory_space<vmem>>, vector<1x128x128xf32>
    %29 = vector.broadcast %14 : vector<1x1x128xf32> to vector<1x128x128xf32>
    %30 = arith.mulf %29, %28 : vector<1x128x128xf32>
    %31 = arith.addf %30, %27 : vector<1x128x128xf32>
    %c0_29 = arith.constant 0 : index
    %c0_30 = arith.constant 0 : index
    %c0_31 = arith.constant 0 : index
    %32 = vector.load %arg8[%c0_29, %c0_30, %c0_31] : memref<1x128x128xf32, #tpu.memory_space<vmem>>, vector<1x128x128xf32>
    tpu.vector_store %arg8[%c0_29, %c0_30, %c0_31], %31 {strides = array<i32>} : memref<1x128x128xf32, #tpu.memory_space<vmem>>, vector<1x128x128xf32>,
    %c0_i32_32 = arith.constant 0 : i32
    %33 = arith.cmpi eq, %arg1, %c0_i32_32 : i32
    %34 = arith.extui %33 : i1 to i32
    %c0_i32_33 = arith.constant 0 : i32
    %35 = arith.cmpi ne, %34, %c0_i32_33 : i32
    scf.if %35 {
      %c0_34 = arith.constant 0 : index
      %c0_35 = arith.constant 0 : index
      %c0_36 = arith.constant 0 : index
      %36 = vector.load %arg7[%c0_34, %c0_35, %c0_36] : memref<1x1x128xf32, #tpu.memory_space<vmem>>, vector<1x1x128xf32>
      %cst_37 = arith.constant 1.000000e+00 : f32
      %37 = vector.broadcast %cst_37 : f32 to vector<1x1x128xf32>
      %38 = arith.divf %37, %36 : vector<1x1x128xf32>
      %c0_38 = arith.constant 0 : index
      %c0_39 = arith.constant 0 : index
      %c0_40 = arith.constant 0 : index
      %39 = vector.load %arg8[%c0_38, %c0_39, %c0_40] : memref<1x128x128xf32, #tpu.memory_space<vmem>>, vector<1x128x128xf32>
      %40 = vector.broadcast %38 : vector<1x1x128xf32> to vector<1x128x128xf32>
      %41 = arith.mulf %39, %40 : vector<1x128x128xf32>
      %c0_41 = arith.constant 0 : index
      %c0_42 = arith.constant 0 : index
      %c0_43 = arith.constant 0 : index
      %42 = vector.load %arg5[%c0_41, %c0_42, %c0_43] : memref<1x128x128xf32, #tpu.memory_space<vmem>>, vector<1x128x128xf32>
      tpu.vector_store %arg5[%c0_41, %c0_42, %c0_43], %41 {strides = array<i32>} : memref<1x128x128xf32, #tpu.memory_space<vmem>>, vector<1x128x128xf32>,
    } else {
    }
    return
  }
  func.func @transform_0(%arg0: i32, %arg1: i32) -> (i32, i32, i32) {
    %c0_i32 = arith.constant 0 : i32
    %c0_i32_0 = arith.constant 0 : i32
    %c0_i32_1 = arith.constant 0 : i32
    return %arg0, %c0_i32, %c0_i32_0 : i32, i32, i32
  }
  func.func @transform_1(%arg0: i32, %arg1: i32) -> (i32, i32, i32) {
    %c0_i32 = arith.constant 0 : i32
    %c0_i32_0 = arith.constant 0 : i32
    return %arg0, %c0_i32, %arg1 : i32, i32, i32
  }
  func.func @transform_2(%arg0: i32, %arg1: i32) -> (i32, i32, i32) {
    %c0_i32 = arith.constant 0 : i32
    %c0_i32_0 = arith.constant 0 : i32
    return %arg0, %c0_i32, %arg1 : i32, i32, i32
  }
  func.func @transform_3(%arg0: i32, %arg1: i32) -> (i32, i32, i32) {
    %c0_i32 = arith.constant 0 : i32
    %c0_i32_0 = arith.constant 0 : i32
    %c0_i32_1 = arith.constant 0 : i32
    return %arg0, %c0_i32, %c0_i32_0 : i32, i32, i32
  }
}

</mosaic_0001>

<llo_original>
// kernel: channel_attention.1
$region0: #{channel_attention.1}
  #allocation0 [shape = 'u32[]', space=smem, size = 0x4, offset = 0x4, fixed_abs, tag = 'smem constant byte address 0x4 - core index']
  #allocation1 [shape = 'u32[72,128]{1,0:T(1,128)}', space=vmem, size = 0x9000, scoped, tag = 'internal scratch']
  #allocation2 [shape = 'f32[1,1,128]{2,1,0:T(1,128)}', space=vmem, size = 0x200, scoped, tag = 'scratch operand']
  #allocation3 [shape = 'f32[1,1,128]{2,1,0:T(1,128)}', space=vmem, size = 0x200, scoped, tag = 'scratch operand']
  #allocation4 [shape = 'f32[1,128,128]{2,1,0:T(8,128)}', space=vmem, size = 0x10000, scoped, tag = 'scratch operand']
  %s0 = inlined_call_operand.vmem [shape: f32[4,128,128], index: 0, kind: input, shape index: {}]
  %s1 = inlined_call_operand.vmem [shape: f32[4,128,128], index: 1, kind: input, shape index: {}]
  %s2 = inlined_call_operand.vmem [shape: f32[4,128,128], index: 2, kind: input, shape index: {}]
  %s3 = inlined_call_operand.vmem [shape: f32[4,128,128], index: 3, kind: output, shape index: {}]
  %s4 = sld [smem:[#allocation0]]
  $region53: #{channel_attention.1} parent=0
    _
  %s6 = ssub.s32 1, %s4
  %s7 = scalar_select 0, %s6, %s4
  loop: start=0, step=1, limit=6
  $region2: #{channel_attention.1} parent=0 // loop_pre_header
    _
  $region3: #{channel_attention.1} parent=0 // loop_header
    %s9 = sphi 0, %s13
    %p10 = scmp.ge.s32.totalorder %s9, 6
    %s16 = sphi 0, %s28
    %s17 = sphi 0, %s24
    %s18 = sphi 0, %s16
    %s19 = sphi 0, %s17
    %s20 = sphi 0, %s18
    %s21 = sphi 0, %s19
    %s31 = sphi 0, %s33
    %s34 = sphi 0, %s31
    %s35 = sphi 0, %s34
    %s51 = sphi 0, %s35
    %s59 = sphi 0, %s61
    %s62 = sphi 0, %s59
    %s63 = sphi 0, %s62
    %s79 = sphi 0, %s63
    %s87 = sphi 0, %s89
    %s90 = sphi 0, %s87
    %s91 = sphi 0, %s90
    %s107 = sphi 0, %s91
    %s113 = sphi 0, %s115
    %s116 = sphi 0, %s113
    %s117 = sphi 0, %s116
    %s133 = sphi 0, %s117
  $region4: #{channel_attention.1} parent=0 // loop_header_branch
    %12 = sbr.rel (%p10) target = $region8
  $region5: #{channel_attention.1} parent=0 // loop_body
    %s14 = ssub.s32 %s9, 1
    %s15 = ssub.s32 %s9, 2
    %s22 = sadd.s32 1, %s17
    %p23 = scmp.ge.s32.totalorder %s22, 1
    %s24 = scalar_select %p23, 0, %s22
    %s25 = sadd.s32 1, %s16
    %s26 = scalar_select %p23, %s25, %s16
    %p27 = scmp.ge.s32.totalorder %s26, 4
    %s28 = scalar_select %p27, 0, %s26
    %s29 = ssub.s32 %s16, %s28
    %p30 = scmp.eq.s32.totalorder %s29, 0
    %s32 = sadd.s32 %s31, 1
    %s33 = scalar_select %p30, %s31, %s32
    %p36 = pneg %p30
    %p37 = scmp.eq.s32.totalorder %s9, 3
    %p38 = por %p36, %p37
    %p39 = scmp.ne.s32.totalorder %s31, %s34
    %p40 = scmp.eq.s32.totalorder %s9, 0
    %p41 = por %p39, %p40
    %p42 = scmp.ne.s32.totalorder %s31, %s34
    %p43 = scmp.eq.s32.totalorder %s14, 3
    %p44 = por %p42, %p43
    %p45 = scmp.ne.s32.totalorder %s34, %s35
    %p46 = scmp.eq.s32.totalorder %s14, 0
    %p47 = por %p45, %p46
    %p48 = scmp.ne.s32.totalorder %s34, %s35
    %p49 = scmp.eq.s32.totalorder %s15, 3
    %p50 = por %p48, %p49
    %p52 = scmp.ne.s32.totalorder %s35, %s51
    %p53 = scmp.eq.s32.totalorder %s15, 0
    %p54 = por %p52, %p53
    %s55 = ssub.s32 %s16, %s28
    %s56 = ssub.s32 %s17, %s24
    %s57 = sor.u32 %s55, %s56
    %p58 = scmp.eq.s32.totalorder %s57, 0
    %s60 = sadd.s32 %s59, 1
    %s61 = scalar_select %p58, %s59, %s60
    %p64 = pneg %p58
    %p65 = scmp.eq.s32.totalorder %s9, 3
    %p66 = por %p64, %p65
    %p67 = scmp.ne.s32.totalorder %s59, %s62
    %p68 = scmp.eq.s32.totalorder %s9, 0
    %p69 = por %p67, %p68
    %p70 = scmp.ne.s32.totalorder %s59, %s62
    %p71 = scmp.eq.s32.totalorder %s14, 3
    %p72 = por %p70, %p71
    %p73 = scmp.ne.s32.totalorder %s62, %s63
    %p74 = scmp.eq.s32.totalorder %s14, 0
    %p75 = por %p73, %p74
    %p76 = scmp.ne.s32.totalorder %s62, %s63
    %p77 = scmp.eq.s32.totalorder %s15, 3
    %p78 = por %p76, %p77
    %p80 = scmp.ne.s32.totalorder %s63, %s79
    %p81 = scmp.eq.s32.totalorder %s15, 0
    %p82 = por %p80, %p81
    %s83 = ssub.s32 %s16, %s28
    %s84 = ssub.s32 %s17, %s24
    %s85 = sor.u32 %s83, %s84
    %p86 = scmp.eq.s32.totalorder %s85, 0
    %s88 = sadd.s32 %s87, 1
    %s89 = scalar_select %p86, %s87, %s88
    %p92 = pneg %p86
    %p93 = scmp.eq.s32.totalorder %s9, 3
    %p94 = por %p92, %p93
    %p95 = scmp.ne.s32.totalorder %s87, %s90
    %p96 = scmp.eq.s32.totalorder %s9, 0
    %p97 = por %p95, %p96
    %p98 = scmp.ne.s32.totalorder %s87, %s90
    %p99 = scmp.eq.s32.totalorder %s14, 3
    %p100 = por %p98, %p99
    %p101 = scmp.ne.s32.totalorder %s90, %s91
    %p102 = scmp.eq.s32.totalorder %s14, 0
    %p103 = por %p101, %p102
    %p104 = scmp.ne.s32.totalorder %s90, %s91
    %p105 = scmp.eq.s32.totalorder %s15, 3
    %p106 = por %p104, %p105
    %p108 = scmp.ne.s32.totalorder %s91, %s107
    %p109 = scmp.eq.s32.totalorder %s15, 0
    %p110 = por %p108, %p109
    %s111 = ssub.s32 %s16, %s28
    %p112 = scmp.eq.s32.totalorder %s111, 0
    %s114 = sadd.s32 %s113, 1
    %s115 = scalar_select %p112, %s113, %s114
    %p118 = pneg %p112
    %p119 = scmp.eq.s32.totalorder %s9, 3
    %p120 = por %p118, %p119
    %p121 = scmp.ne.s32.totalorder %s113, %s116
    %p122 = scmp.eq.s32.totalorder %s9, 0
    %p123 = por %p121, %p122
    %p124 = scmp.ne.s32.totalorder %s113, %s116
    %p125 = scmp.eq.s32.totalorder %s14, 3
    %p126 = por %p124, %p125
    %p127 = scmp.ne.s32.totalorder %s116, %s117
    %p128 = scmp.eq.s32.totalorder %s14, 0
    %p129 = por %p127, %p128
    %p130 = scmp.ne.s32.totalorder %s116, %s117
    %p131 = scmp.eq.s32.totalorder %s15, 3
    %p132 = por %p130, %p131
    %p134 = scmp.ne.s32.totalorder %s117, %s133
    %p135 = scmp.eq.s32.totalorder %s15, 0
    %p136 = por %p134, %p135
    %p137 = scmp.le.s32.totalorder 1, %s9
    %p138 = scmp.lt.s32.totalorder %s9, 5
    %p139 = pnand %p137, %p138
    %p140 = pneg %p139
    // Predicated region
    $region9: #{channel_attention.1} parent=5 // pred_check
      _
    $region10: #{channel_attention.1} parent=5 // pred_check_branch
      %142 = sbr.rel (%p139) target = $region12
    $region11: #{channel_attention.1} parent=5 // pred_region
      %s143 = ssub.s32 %s9, 1
    $region12: #{channel_attention.1} parent=5 // pred_fallthru
      _
    %p144 = scmp.lt.s32.totalorder %s9, 4
    // Predicated region
    $region13: #{channel_attention.1} parent=5 // pred_check
      %p145 = pneg %p144
    $region14: #{channel_attention.1} parent=5 // pred_check_branch
      %147 = sbr.rel (%p145) target = $region16
    $region15: #{channel_attention.1} parent=5 // pred_region
      // Predicated region
      $region17: #{channel_attention.1} parent=15 // pred_check
        %p148 = pneg %p41
      $region18: #{channel_attention.1} parent=15 // pred_check_branch
        %150 = sbr.rel (%p148) target = $region20
      $region19: #{channel_attention.1} parent=15 // pred_region
        %p151 = scmp.lt.s32.totalorder %s16, 3
        %s152 = scalar_select %p151, %s16, 3
        %s153 = smul.addr %s152, 16
        %s154 = smul.addr %s153, 8
        %s155 = scalar_lea.vmem %s0, %s154
      $region20: #{channel_attention.1} parent=15 // pred_fallthru
        _
      // Predicated region
      $region21: #{channel_attention.1} parent=15 // pred_check
        %p156 = pneg %p69
      $region22: #{channel_attention.1} parent=15 // pred_check_branch
        %158 = sbr.rel (%p156) target = $region24
      $region23: #{channel_attention.1} parent=15 // pred_region
        %p159 = scmp.lt.s32.totalorder %s16, 3
        %s160 = scalar_select %p159, %s16, 3
        %p161 = scmp.lt.s32.totalorder %s17, 0
        %s162 = scalar_select %p161, %s17, 0
        %s163 = smul.addr %s160, 16
        %s164 = sadd.s32 %s162, %s163
        %s165 = smul.addr %s164, 8
        %s166 = scalar_lea.vmem %s1, %s165
      $region24: #{channel_attention.1} parent=15 // pred_fallthru
        _
      // Predicated region
      $region25: #{channel_attention.1} parent=15 // pred_check
        %p167 = pneg %p97
      $region26: #{channel_attention.1} parent=15 // pred_check_branch
        %169 = sbr.rel (%p167) target = $region28
      $region27: #{channel_attention.1} parent=15 // pred_region
        %p170 = scmp.lt.s32.totalorder %s16, 3
        %s171 = scalar_select %p170, %s16, 3
        %p172 = scmp.lt.s32.totalorder %s17, 0
        %s173 = scalar_select %p172, %s17, 0
        %s174 = smul.addr %s171, 16
        %s175 = sadd.s32 %s173, %s174
        %s176 = smul.addr %s175, 8
        %s177 = scalar_lea.vmem %s2, %s176
      $region28: #{channel_attention.1} parent=15 // pred_fallthru
        _
    $region16: #{channel_attention.1} parent=5 // pred_fallthru
      _
    %p178 = scmp.le.s32.totalorder 1, %s9
    %p179 = scmp.lt.s32.totalorder %s9, 5
    %p180 = pnand %p178, %p179
    %p181 = pneg %p180
    // Predicated region
    $region29: #{channel_attention.1} parent=5 // pred_check
      _
    $region30: #{channel_attention.1} parent=5 // pred_check_branch
      %183 = sbr.rel (%p180) target = $region32
    $region31: #{channel_attention.1} parent=5 // pred_region
      %s184 = ssub.s32 %s9, 1
      %p185 = scmp.lt.s32.totalorder %s18, 3
      %s186 = scalar_select %p185, %s18, 3
      %s187 = smul.addr %s186, 16
      %s188 = smul.addr %s187, 8
      %s189 = scalar_lea.vmem %s0, %s188
      %p190 = pneg %p47
      %p191 = pneg %p44
      %p192 = scmp.lt.s32.totalorder %s18, 3
      %s193 = scalar_select %p192, %s18, 3
      %p194 = scmp.lt.s32.totalorder %s19, 0
      %s195 = scalar_select %p194, %s19, 0
      %s196 = smul.addr %s193, 16
      %s197 = sadd.s32 %s195, %s196
      %s198 = smul.addr %s197, 8
      %s199 = scalar_lea.vmem %s1, %s198
      %p200 = pneg %p75
      %p201 = pneg %p72
      %p202 = scmp.lt.s32.totalorder %s18, 3
      %s203 = scalar_select %p202, %s18, 3
      %p204 = scmp.lt.s32.totalorder %s19, 0
      %s205 = scalar_select %p204, %s19, 0
      %s206 = smul.addr %s203, 16
      %s207 = sadd.s32 %s205, %s206
      %s208 = smul.addr %s207, 8
      %s209 = scalar_lea.vmem %s2, %s208
      %p210 = pneg %p103
      %p211 = pneg %p100
      %p212 = pneg %p129
      %p213 = pneg %p126
      %p214 = scmp.lt.s32.totalorder %s18, 3
      %s215 = scalar_select %p214, %s18, 3
      %s216 = smul.addr %s215, 16
      %s217 = smul.addr %s216, 8
      %s218 = scalar_lea.vmem %s3, %s217
      %p219 = scmp.lt.s32.totalorder %s18, 3
      %s220 = scalar_select %p219, %s18, 3
      %s221 = smul.addr %s220, 16
      %s222 = smul.addr %s221, 8
      %s223 = scalar_lea.vmem %s0, %s222
      %p224 = scmp.lt.s32.totalorder %s18, 3
      %s225 = scalar_select %p224, %s18, 3
      %p226 = scmp.lt.s32.totalorder %s19, 0
      %s227 = scalar_select %p226, %s19, 0
      %s228 = smul.addr %s225, 16
      %s229 = sadd.s32 %s227, %s228
      %s230 = smul.addr %s229, 8
      %s231 = scalar_lea.vmem %s1, %s230
      %p232 = scmp.lt.s32.totalorder %s18, 3
      %s233 = scalar_select %p232, %s18, 3
      %p234 = scmp.lt.s32.totalorder %s19, 0
      %s235 = scalar_select %p234, %s19, 0
      %s236 = smul.addr %s233, 16
      %s237 = sadd.s32 %s235, %s236
      %s238 = smul.addr %s237, 8
      %s239 = scalar_lea.vmem %s2, %s238
      %p240 = scmp.lt.s32.totalorder %s18, 3
      %s241 = scalar_select %p240, %s18, 3
      %s242 = smul.addr %s241, 16
      %s243 = smul.addr %s242, 8
      %s244 = scalar_lea.vmem %s3, %s243
      %p245 = scmp.eq.s32.totalorder %s19, 0
      // Predicated region
      $region33: #{channel_attention.1} parent=31 // pred_check
        %p246 = pneg %p245
      $region34: #{channel_attention.1} parent=31 // pred_check_branch
        %248 = sbr.rel (%p246) target = $region36
      $region35: #{channel_attention.1} parent=31 // pred_region
        %249 = vst [vmem:[#allocation2] sm:$0x1] -inf
        %250 = vst [vmem:[#allocation3] sm:$0x1] 0.0
        %251 = vst [vmem:[#allocation4] sm:$0xff] 0.0
        %252 = vst [vmem:[#allocation4 + $0x8] sm:$0xff] 0.0
        %253 = vst [vmem:[#allocation4 + $0x10] sm:$0xff] 0.0
        %254 = vst [vmem:[#allocation4 + $0x18] sm:$0xff] 0.0
        %255 = vst [vmem:[#allocation4 + $0x20] sm:$0xff] 0.0
        %256 = vst [vmem:[#allocation4 + $0x28] sm:$0xff] 0.0
        %257 = vst [vmem:[#allocation4 + $0x30] sm:$0xff] 0.0
        %258 = vst [vmem:[#allocation4 + $0x38] sm:$0xff] 0.0
        %259 = vst [vmem:[#allocation4 + $0x40] sm:$0xff] 0.0
        %260 = vst [vmem:[#allocation4 + $0x48] sm:$0xff] 0.0
        %261 = vst [vmem:[#allocation4 + $0x50] sm:$0xff] 0.0
        %262 = vst [vmem:[#allocation4 + $0x58] sm:$0xff] 0.0
        %263 = vst [vmem:[#allocation4 + $0x60] sm:$0xff] 0.0
        %264 = vst [vmem:[#allocation4 + $0x68] sm:$0xff] 0.0
        %265 = vst [vmem:[#allocation4 + $0x70] sm:$0xff] 0.0
        %266 = vst [vmem:[#allocation4 + $0x78] sm:$0xff] 0.0
      $region36: #{channel_attention.1} parent=31 // pred_fallthru
        _
      %v267 = vld [vmem:[%s223] sm:$0xff]
      %v268 = vld [vmem:[%s223 + $0x8] sm:$0xff]
      %v269 = vld [vmem:[%s223 + $0x10] sm:$0xff]
      %v270 = vld [vmem:[%s223 + $0x18] sm:$0xff]
      %v271 = vld [vmem:[%s223 + $0x20] sm:$0xff]
      %v272 = vld [vmem:[%s223 + $0x28] sm:$0xff]
      %v273 = vld [vmem:[%s223 + $0x30] sm:$0xff]
      %v274 = vld [vmem:[%s223 + $0x38] sm:$0xff]
      %v275 = vld [vmem:[%s223 + $0x40] sm:$0xff]
      %v276 = vld [vmem:[%s223 + $0x48] sm:$0xff]
      %v277 = vld [vmem:[%s223 + $0x50] sm:$0xff]
      %v278 = vld [vmem:[%s223 + $0x58] sm:$0xff]
      %v279 = vld [vmem:[%s223 + $0x60] sm:$0xff]
      %v280 = vld [vmem:[%s223 + $0x68] sm:$0xff]
      %v281 = vld [vmem:[%s223 + $0x70] sm:$0xff]
      %v282 = vld [vmem:[%s223 + $0x78] sm:$0xff]
      %v283 = vld [vmem:[%s231] sm:$0xff]
      %v284 = vld [vmem:[%s231 + $0x8] sm:$0xff]
      %v285 = vld [vmem:[%s231 + $0x10] sm:$0xff]
      %v286 = vld [vmem:[%s231 + $0x18] sm:$0xff]
      %v287 = vld [vmem:[%s231 + $0x20] sm:$0xff]
      %v288 = vld [vmem:[%s231 + $0x28] sm:$0xff]
      %v289 = vld [vmem:[%s231 + $0x30] sm:$0xff]
      %v290 = vld [vmem:[%s231 + $0x38] sm:$0xff]
      %v291 = vld [vmem:[%s231 + $0x40] sm:$0xff]
      %v292 = vld [vmem:[%s231 + $0x48] sm:$0xff]
      %v293 = vld [vmem:[%s231 + $0x50] sm:$0xff]
      %v294 = vld [vmem:[%s231 + $0x58] sm:$0xff]
      %v295 = vld [vmem:[%s231 + $0x60] sm:$0xff]
      %v296 = vld [vmem:[%s231 + $0x68] sm:$0xff]
      %v297 = vld [vmem:[%s231 + $0x70] sm:$0xff]
      %v298 = vld [vmem:[%s231 + $0x78] sm:$0xff]
      %v299 = vld [vmem:[%s239] sm:$0xff]
      %v300 = vld [vmem:[%s239 + $0x8] sm:$0xff]
      %v301 = vld [vmem:[%s239 + $0x10] sm:$0xff]
      %v302 = vld [vmem:[%s239 + $0x18] sm:$0xff]
      %v303 = vld [vmem:[%s239 + $0x20] sm:$0xff]
      %v304 = vld [vmem:[%s239 + $0x28] sm:$0xff]
      %v305 = vld [vmem:[%s239 + $0x30] sm:$0xff]
      %v306 = vld [vmem:[%s239 + $0x38] sm:$0xff]
      %v307 = vld [vmem:[%s239 + $0x40] sm:$0xff]
      %v308 = vld [vmem:[%s239 + $0x48] sm:$0xff]
      %v309 = vld [vmem:[%s239 + $0x50] sm:$0xff]
      %v310 = vld [vmem:[%s239 + $0x58] sm:$0xff]
      %v311 = vld [vmem:[%s239 + $0x60] sm:$0xff]
      %v312 = vld [vmem:[%s239 + $0x68] sm:$0xff]
      %v313 = vld [vmem:[%s239 + $0x70] sm:$0xff]
      %v314 = vld [vmem:[%s239 + $0x78] sm:$0xff]
      %315 = vxpose.xlu0.b32.start [1/16] %v283, 128
      %316 = vxpose.xlu0.b32.cont [2/16] %v284, 128
      %317 = vxpose.xlu0.b32.cont [3/16] %v285, 128
      %318 = vxpose.xlu0.b32.cont [4/16] %v286, 128
      %319 = vxpose.xlu0.b32.cont [5/16] %v287, 128
      %320 = vxpose.xlu0.b32.cont [6/16] %v288, 128
      %321 = vxpose.xlu0.b32.cont [7/16] %v289, 128
      %322 = vxpose.xlu0.b32.cont [8/16] %v290, 128
      %323 = vxpose.xlu0.b32.cont [9/16] %v291, 128
      %324 = vxpose.xlu0.b32.cont [10/16] %v292, 128
      %325 = vxpose.xlu0.b32.cont [11/16] %v293, 128
      %326 = vxpose.xlu0.b32.cont [12/16] %v294, 128
      %327 = vxpose.xlu0.b32.cont [13/16] %v295, 128
      %328 = vxpose.xlu0.b32.cont [14/16] %v296, 128
      %329 = vxpose.xlu0.b32.cont [15/16] %v297, 128
      %330 = vxpose.xlu0.b32.end [16/16] %v298, 128
      %v331 = vpop.trf.xlu0
      %v332 = vpop.trf.xlu0
      %v333 = vpop.trf.xlu0
      %v334 = vpop.trf.xlu0
      %v335 = vpop.trf.xlu0
      %v336 = vpop.trf.xlu0
      %v337 = vpop.trf.xlu0
      %v338 = vpop.trf.xlu0
      %v339 = vpop.trf.xlu0
      %v340 = vpop.trf.xlu0
      %v341 = vpop.trf.xlu0
      %v342 = vpop.trf.xlu0
      %v343 = vpop.trf.xlu0
      %v344 = vpop.trf.xlu0
      %v345 = vpop.trf.xlu0
      %v346 = vpop.trf.xlu0
      %347 = vmatpush.msra.mxu0 %v282
      %348 = vmatpush.msra.mxu0 %v281
      %349 = vmatpush.msra.mxu0 %v280
      %350 = vmatpush.msra.mxu0 %v279
      %351 = vmatpush.msra.mxu0 %v278
      %352 = vmatpush.msra.mxu0 %v277
      %353 = vmatpush.msra.mxu0 %v276
      %354 = vmatpush.msra.mxu0 %v275
      %355 = vmatpush.msra.mxu0 %v274
      %356 = vmatpush.msra.mxu0 %v273
      %357 = vmatpush.msra.mxu0 %v272
      %358 = vmatpush.msra.mxu0 %v271
      %359 = vmatpush.msra.mxu0 %v270
      %360 = vmatpush.msra.mxu0 %v269
      %361 = vmatpush.msra.mxu0 %v268
      %362 = vmatpush.msra.mxu0 %v267
      %363 = vmatmul.f32.gmra.mxu0 %v331
      %v364 = vpop.f32.mrf.mxu0
      %v365 = vadd.f32 0.0, %v364
      %366 = vmatmul.f32.gmra.mxu0 %v332
      %v367 = vpop.f32.mrf.mxu0
      %v368 = vadd.f32 0.0, %v367
      %369 = vmatmul.f32.gmra.mxu0 %v333
      %v370 = vpop.f32.mrf.mxu0
      %v371 = vadd.f32 0.0, %v370
      %372 = vmatmul.f32.gmra.mxu0 %v334
      %v373 = vpop.f32.mrf.mxu0
      %v374 = vadd.f32 0.0, %v373
      %375 = vmatmul.f32.gmra.mxu0 %v335
      %v376 = vpop.f32.mrf.mxu0
      %v377 = vadd.f32 0.0, %v376
      %378 = vmatmul.f32.gmra.mxu0 %v336
      %v379 = vpop.f32.mrf.mxu0
      %v380 = vadd.f32 0.0, %v379
      %381 = vmatmul.f32.gmra.mxu0 %v337
      %v382 = vpop.f32.mrf.mxu0
      %v383 = vadd.f32 0.0, %v382
      %384 = vmatmul.f32.gmra.mxu0 %v338
      %v385 = vpop.f32.mrf.mxu0
      %v386 = vadd.f32 0.0, %v385
      %387 = vmatmul.f32.gmra.mxu0 %v339
      %v388 = vpop.f32.mrf.mxu0
      %v389 = vadd.f32 0.0, %v388
      %390 = vmatmul.f32.gmra.mxu0 %v340
      %v391 = vpop.f32.mrf.mxu0
      %v392 = vadd.f32 0.0, %v391
      %393 = vmatmul.f32.gmra.mxu0 %v341
      %v394 = vpop.f32.mrf.mxu0
      %v395 = vadd.f32 0.0, %v394
      %396 = vmatmul.f32.gmra.mxu0 %v342
      %v397 = vpop.f32.mrf.mxu0
      %v398 = vadd.f32 0.0, %v397
      %399 = vmatmul.f32.gmra.mxu0 %v343
      %v400 = vpop.f32.mrf.mxu0
      %v401 = vadd.f32 0.0, %v400
      %402 = vmatmul.f32.gmra.mxu0 %v344
      %v403 = vpop.f32.mrf.mxu0
      %v404 = vadd.f32 0.0, %v403
      %405 = vmatmul.f32.gmra.mxu0 %v345
      %v406 = vpop.f32.mrf.mxu0
      %v407 = vadd.f32 0.0, %v406
      %408 = vmatmul.f32.gmra.mxu0 %v346
      %v409 = vpop.f32.mrf.mxu0
      %v410 = vadd.f32 0.0, %v409
      %411 = vdwg.mxu0
      %v412 = vld [vmem:[#allocation2] sm:$0x1]
      %v413 = vmax.f32 %v365, %v377
      %v414 = vmax.f32 %v368, %v380
      %v415 = vmax.f32 %v371, %v383
      %v416 = vmax.f32 %v374, %v386
      %v417 = vmax.f32 %v413, %v389
      %v418 = vmax.f32 %v414, %v392
      %v419 = vmax.f32 %v415, %v395
      %v420 = vmax.f32 %v416, %v398
      %v421 = vmax.f32 %v417, %v401
      %v422 = vmax.f32 %v418, %v404
      %v423 = vmax.f32 %v419, %v407
      %v424 = vmax.f32 %v420, %v410
      %v425 = vmax.f32 %v421, %v422
      %v426 = vmax.f32 %v423, %v424
      %v427 = vmax.f32 %v425, %v426
      %v428 = vrot.slane %v427, 4
      %v429 = vmax.f32 %v427, %v428
      %v430 = vrot.slane %v429, 2
      %v431 = vmax.f32 %v429, %v430
      %v432 = vrot.slane %v431, 1
      %v433 = vmax.f32 %v431, %v432
      %v434 = vmax.f32 %v412, %v433
      %v435 = vsub.f32 %v412, %v434
      %v436 = vmul.f32 %v435, 0.088388346
      %v437 = vmul.f32 %v436, 1.442695
      %v438 = vpow.pop %v437
      %v440 = vperm.slane %v434, 0
      %v442 = vsub.f32 %v365, %v440
      %v443 = vsub.f32 %v368, %v440
      %v444 = vsub.f32 %v371, %v440
      %v445 = vsub.f32 %v374, %v440
      %v446 = vsub.f32 %v377, %v440
      %v447 = vsub.f32 %v380, %v440
      %v448 = vsub.f32 %v383, %v440
      %v449 = vsub.f32 %v386, %v440
      %v450 = vsub.f32 %v389, %v440
      %v451 = vsub.f32 %v392, %v440
      %v452 = vsub.f32 %v395, %v440
      %v453 = vsub.f32 %v398, %v440
      %v454 = vsub.f32 %v401, %v440
      %v455 = vsub.f32 %v404, %v440
      %v456 = vsub.f32 %v407, %v440
      %v457 = vsub.f32 %v410, %v440
      %v458 = vmul.f32 %v442, 0.088388346
      %v459 = vmul.f32 %v443, 0.088388346
      %v460 = vmul.f32 %v444, 0.088388346
      %v461 = vmul.f32 %v445, 0.088388346
      %v462 = vmul.f32 %v446, 0.088388346
      %v463 = vmul.f32 %v447, 0.088388346
      %v464 = vmul.f32 %v448, 0.088388346
      %v465 = vmul.f32 %v449, 0.088388346
      %v466 = vmul.f32 %v450, 0.088388346
      %v467 = vmul.f32 %v451, 0.088388346
      %v468 = vmul.f32 %v452, 0.088388346
      %v469 = vmul.f32 %v453, 0.088388346
      %v470 = vmul.f32 %v454, 0.088388346
      %v471 = vmul.f32 %v455, 0.088388346
      %v472 = vmul.f32 %v456, 0.088388346
      %v473 = vmul.f32 %v457, 0.088388346
      %v474 = vmul.f32 %v458, 1.442695
      %v475 = vpow.pop %v474
      %v476 = vmul.f32 %v459, 1.442695
      %v477 = vpow.pop %v476
      %v478 = vmul.f32 %v460, 1.442695
      %v479 = vpow.pop %v478
      %v480 = vmul.f32 %v461, 1.442695
      %v481 = vpow.pop %v480
      %v482 = vmul.f32 %v462, 1.442695
      %v483 = vpow.pop %v482
      %v484 = vmul.f32 %v463, 1.442695
      %v485 = vpow.pop %v484
      %v486 = vmul.f32 %v464, 1.442695
      %v487 = vpow.pop %v486
      %v488 = vmul.f32 %v465, 1.442695
      %v489 = vpow.pop %v488
      %v490 = vmul.f32 %v466, 1.442695
      %v491 = vpow.pop %v490
      %v492 = vmul.f32 %v467, 1.442695
      %v493 = vpow.pop %v492
      %v494 = vmul.f32 %v468, 1.442695
      %v495 = vpow.pop %v494
      %v496 = vmul.f32 %v469, 1.442695
      %v497 = vpow.pop %v496
      %v498 = vmul.f32 %v470, 1.442695
      %v499 = vpow.pop %v498
      %v500 = vmul.f32 %v471, 1.442695
      %v501 = vpow.pop %v500
      %v502 = vmul.f32 %v472, 1.442695
      %v503 = vpow.pop %v502
      %v504 = vmul.f32 %v473, 1.442695
      %v505 = vpow.pop %v504
      %v506 = vld [vmem:[#allocation3] sm:$0x1]
      %v507 = vmul.f32 %v438, %v506
      %v508 = vadd.f32 %v475, %v477
      %v509 = vadd.f32 %v508, %v479
      %v510 = vadd.f32 %v509, %v481
      %v511 = vadd.f32 %v510, %v483
      %v512 = vadd.f32 %v511, %v485
      %v513 = vadd.f32 %v512, %v487
      %v514 = vadd.f32 %v513, %v489
      %v515 = vadd.f32 %v514, %v491
      %v516 = vadd.f32 %v515, %v493
      %v517 = vadd.f32 %v516, %v495
      %v518 = vadd.f32 %v517, %v497
      %v519 = vadd.f32 %v518, %v499
      %v520 = vadd.f32 %v519, %v501
      %v521 = vadd.f32 %v520, %v503
      %v522 = vadd.f32 %v521, %v505
      %v523 = vrot.slane %v522, 4
      %v524 = vadd.f32 %v522, %v523
      %v525 = vrot.slane %v524, 2
      %v526 = vadd.f32 %v524, %v525
      %v527 = vrot.slane %v526, 1
      %v528 = vadd.f32 %v526, %v527
      %v529 = vadd.f32 %v507, %v528
      %530 = vst [vmem:[#allocation3] sm:$0x1] %v529
      %531 = vst [vmem:[#allocation2] sm:$0x1] %v434
      %532 = vmatpush.msra.mxu0 %v505
      %533 = vmatpush.msra.mxu0 %v503
      %534 = vmatpush.msra.mxu0 %v501
      %535 = vmatpush.msra.mxu0 %v499
      %536 = vmatpush.msra.mxu0 %v497
      %537 = vmatpush.msra.mxu0 %v495
      %538 = vmatpush.msra.mxu0 %v493
      %539 = vmatpush.msra.mxu0 %v491
      %540 = vmatpush.msra.mxu0 %v489
      %541 = vmatpush.msra.mxu0 %v487
      %542 = vmatpush.msra.mxu0 %v485
      %543 = vmatpush.msra.mxu0 %v483
      %544 = vmatpush.msra.mxu0 %v481
      %545 = vmatpush.msra.mxu0 %v479
      %546 = vmatpush.msra.mxu0 %v477
      %547 = vmatpush.msra.mxu0 %v475
      %548 = vmatmul.f32.gmra.mxu0 %v299
      %v549 = vpop.f32.mrf.mxu0
      %v550 = vadd.f32 0.0, %v549
      %551 = vmatmul.f32.gmra.mxu0 %v300
      %v552 = vpop.f32.mrf.mxu0
      %v553 = vadd.f32 0.0, %v552
      %554 = vmatmul.f32.gmra.mxu0 %v301
      %v555 = vpop.f32.mrf.mxu0
      %v556 = vadd.f32 0.0, %v555
      %557 = vmatmul.f32.gmra.mxu0 %v302
      %v558 = vpop.f32.mrf.mxu0
      %v559 = vadd.f32 0.0, %v558
      %560 = vmatmul.f32.gmra.mxu0 %v303
      %v561 = vpop.f32.mrf.mxu0
      %v562 = vadd.f32 0.0, %v561
      %563 = vmatmul.f32.gmra.mxu0 %v304
      %v564 = vpop.f32.mrf.mxu0
      %v565 = vadd.f32 0.0, %v564
      %566 = vmatmul.f32.gmra.mxu0 %v305
      %v567 = vpop.f32.mrf.mxu0
      %v568 = vadd.f32 0.0, %v567
      %569 = vmatmul.f32.gmra.mxu0 %v306
      %v570 = vpop.f32.mrf.mxu0
      %v571 = vadd.f32 0.0, %v570
      %572 = vmatmul.f32.gmra.mxu0 %v307
      %v573 = vpop.f32.mrf.mxu0
      %v574 = vadd.f32 0.0, %v573
      %575 = vmatmul.f32.gmra.mxu0 %v308
      %v576 = vpop.f32.mrf.mxu0
      %v577 = vadd.f32 0.0, %v576
      %578 = vmatmul.f32.gmra.mxu0 %v309
      %v579 = vpop.f32.mrf.mxu0
      %v580 = vadd.f32 0.0, %v579
      %581 = vmatmul.f32.gmra.mxu0 %v310
      %v582 = vpop.f32.mrf.mxu0
      %v583 = vadd.f32 0.0, %v582
      %584 = vmatmul.f32.gmra.mxu0 %v311
      %v585 = vpop.f32.mrf.mxu0
      %v586 = vadd.f32 0.0, %v585
      %587 = vmatmul.f32.gmra.mxu0 %v312
      %v588 = vpop.f32.mrf.mxu0
      %v589 = vadd.f32 0.0, %v588
      %590 = vmatmul.f32.gmra.mxu0 %v313
      %v591 = vpop.f32.mrf.mxu0
      %v592 = vadd.f32 0.0, %v591
      %593 = vmatmul.f32.gmra.mxu0 %v314
      %v594 = vpop.f32.mrf.mxu0
      %v595 = vadd.f32 0.0, %v594
      %596 = vdwg.mxu0
      %v597 = vld [vmem:[#allocation4] sm:$0xff]
      %v598 = vld [vmem:[#allocation4 + $0x8] sm:$0xff]
      %v599 = vld [vmem:[#allocation4 + $0x10] sm:$0xff]
      %v600 = vld [vmem:[#allocation4 + $0x18] sm:$0xff]
      %v601 = vld [vmem:[#allocation4 + $0x20] sm:$0xff]
      %v602 = vld [vmem:[#allocation4 + $0x28] sm:$0xff]
      %v603 = vld [vmem:[#allocation4 + $0x30] sm:$0xff]
      %v604 = vld [vmem:[#allocation4 + $0x38] sm:$0xff]
      %v605 = vld [vmem:[#allocation4 + $0x40] sm:$0xff]
      %v606 = vld [vmem:[#allocation4 + $0x48] sm:$0xff]
      %v607 = vld [vmem:[#allocation4 + $0x50] sm:$0xff]
      %v608 = vld [vmem:[#allocation4 + $0x58] sm:$0xff]
      %v609 = vld [vmem:[#allocation4 + $0x60] sm:$0xff]
      %v610 = vld [vmem:[#allocation4 + $0x68] sm:$0xff]
      %v611 = vld [vmem:[#allocation4 + $0x70] sm:$0xff]
      %v612 = vld [vmem:[#allocation4 + $0x78] sm:$0xff]
      %v614 = vperm.slane %v438, 0
      %v616 = vmul.f32 %v614, %v597
      %v617 = vmul.f32 %v614, %v598
      %v618 = vmul.f32 %v614, %v599
      %v619 = vmul.f32 %v614, %v600
      %v620 = vmul.f32 %v614, %v601
      %v621 = vmul.f32 %v614, %v602
      %v622 = vmul.f32 %v614, %v603
      %v623 = vmul.f32 %v614, %v604
      %v624 = vmul.f32 %v614, %v605
      %v625 = vmul.f32 %v614, %v606
      %v626 = vmul.f32 %v614, %v607
      %v627 = vmul.f32 %v614, %v608
      %v628 = vmul.f32 %v614, %v609
      %v629 = vmul.f32 %v614, %v610
      %v630 = vmul.f32 %v614, %v611
      %v631 = vmul.f32 %v614, %v612
      %v632 = vadd.f32 %v616, %v550
      %v633 = vadd.f32 %v617, %v553
      %v634 = vadd.f32 %v618, %v556
      %v635 = vadd.f32 %v619, %v559
      %v636 = vadd.f32 %v620, %v562
      %v637 = vadd.f32 %v621, %v565
      %v638 = vadd.f32 %v622, %v568
      %v639 = vadd.f32 %v623, %v571
      %v640 = vadd.f32 %v624, %v574
      %v641 = vadd.f32 %v625, %v577
      %v642 = vadd.f32 %v626, %v580
      %v643 = vadd.f32 %v627, %v583
      %v644 = vadd.f32 %v628, %v586
      %v645 = vadd.f32 %v629, %v589
      %v646 = vadd.f32 %v630, %v592
      %v647 = vadd.f32 %v631, %v595
      %648 = vst [vmem:[#allocation4] sm:$0xff] %v632
      %649 = vst [vmem:[#allocation4 + $0x8] sm:$0xff] %v633
      %650 = vst [vmem:[#allocation4 + $0x10] sm:$0xff] %v634
      %651 = vst [vmem:[#allocation4 + $0x18] sm:$0xff] %v635
      %652 = vst [vmem:[#allocation4 + $0x20] sm:$0xff] %v636
      %653 = vst [vmem:[#allocation4 + $0x28] sm:$0xff] %v637
      %654 = vst [vmem:[#allocation4 + $0x30] sm:$0xff] %v638
      %655 = vst [vmem:[#allocation4 + $0x38] sm:$0xff] %v639
      %656 = vst [vmem:[#allocation4 + $0x40] sm:$0xff] %v640
      %657 = vst [vmem:[#allocation4 + $0x48] sm:$0xff] %v641
      %658 = vst [vmem:[#allocation4 + $0x50] sm:$0xff] %v642
      %659 = vst [vmem:[#allocation4 + $0x58] sm:$0xff] %v643
      %660 = vst [vmem:[#allocation4 + $0x60] sm:$0xff] %v644
      %661 = vst [vmem:[#allocation4 + $0x68] sm:$0xff] %v645
      %662 = vst [vmem:[#allocation4 + $0x70] sm:$0xff] %v646
      %663 = vst [vmem:[#allocation4 + $0x78] sm:$0xff] %v647
      // Predicated region
      $region37: #{channel_attention.1} parent=31 // pred_check
        %p664 = pneg %p245
      $region38: #{channel_attention.1} parent=31 // pred_check_branch
        %666 = sbr.rel (%p664) target = $region40
      $region39: #{channel_attention.1} parent=31 // pred_region
        %v667 = vld [vmem:[#allocation3] sm:$0x1]
        %v668 = vrcp.pop %v667
        %v669 = vmul.f32 %v667, %v668
        %v670 = vsub.f32 1.0, %v669
        %v671 = vmul.f32 %v668, %v670
        %v672 = vadd.f32 %v668, %v671
        %vm673 = vweird.f32 %v667
        %vm674 = vweird.f32 %v668
        %vm675 = vmor %vm673, %vm674
        %v676 = vsel %vm675, %v668, %v672
        %v677 = vand.u32 2147483647, %v667
        %vm678 = vcmp.eq.f32.partialorder %v677, 8.507059e+37
        %v679 = vand.u32 %v667, 2147483648
        %v680 = vor.u32 1.1754944e-38, %v679
        %v681 = vsel %vm678, %v680, %v676
        %v682 = vmul.f32 1.0, %v681
        %v683 = vld [vmem:[#allocation4] sm:$0xff]
        %v684 = vld [vmem:[#allocation4 + $0x8] sm:$0xff]
        %v685 = vld [vmem:[#allocation4 + $0x10] sm:$0xff]
        %v686 = vld [vmem:[#allocation4 + $0x18] sm:$0xff]
        %v687 = vld [vmem:[#allocation4 + $0x20] sm:$0xff]
        %v688 = vld [vmem:[#allocation4 + $0x28] sm:$0xff]
        %v689 = vld [vmem:[#allocation4 + $0x30] sm:$0xff]
        %v690 = vld [vmem:[#allocation4 + $0x38] sm:$0xff]
        %v691 = vld [vmem:[#allocation4 + $0x40] sm:$0xff]
        %v692 = vld [vmem:[#allocation4 + $0x48] sm:$0xff]
        %v693 = vld [vmem:[#allocation4 + $0x50] sm:$0xff]
        %v694 = vld [vmem:[#allocation4 + $0x58] sm:$0xff]
        %v695 = vld [vmem:[#allocation4 + $0x60] sm:$0xff]
        %v696 = vld [vmem:[#allocation4 + $0x68] sm:$0xff]
        %v697 = vld [vmem:[#allocation4 + $0x70] sm:$0xff]
        %v698 = vld [vmem:[#allocation4 + $0x78] sm:$0xff]
        %v700 = vperm.slane %v682, 0
        %v702 = vmul.f32 %v683, %v700
        %v703 = vmul.f32 %v684, %v700
        %v704 = vmul.f32 %v685, %v700
        %v705 = vmul.f32 %v686, %v700
        %v706 = vmul.f32 %v687, %v700
        %v707 = vmul.f32 %v688, %v700
        %v708 = vmul.f32 %v689, %v700
        %v709 = vmul.f32 %v690, %v700
        %v710 = vmul.f32 %v691, %v700
        %v711 = vmul.f32 %v692, %v700
        %v712 = vmul.f32 %v693, %v700
        %v713 = vmul.f32 %v694, %v700
        %v714 = vmul.f32 %v695, %v700
        %v715 = vmul.f32 %v696, %v700
        %v716 = vmul.f32 %v697, %v700
        %v717 = vmul.f32 %v698, %v700
        %718 = vst [vmem:[%s244] sm:$0xff] %v702
        %719 = vst [vmem:[%s244 + $0x8] sm:$0xff] %v703
        %720 = vst [vmem:[%s244 + $0x10] sm:$0xff] %v704
        %721 = vst [vmem:[%s244 + $0x18] sm:$0xff] %v705
        %722 = vst [vmem:[%s244 + $0x20] sm:$0xff] %v706
        %723 = vst [vmem:[%s244 + $0x28] sm:$0xff] %v707
        %724 = vst [vmem:[%s244 + $0x30] sm:$0xff] %v708
        %725 = vst [vmem:[%s244 + $0x38] sm:$0xff] %v709
        %726 = vst [vmem:[%s244 + $0x40] sm:$0xff] %v710
        %727 = vst [vmem:[%s244 + $0x48] sm:$0xff] %v711
        %728 = vst [vmem:[%s244 + $0x50] sm:$0xff] %v712
        %729 = vst [vmem:[%s244 + $0x58] sm:$0xff] %v713
        %730 = vst [vmem:[%s244 + $0x60] sm:$0xff] %v714
        %731 = vst [vmem:[%s244 + $0x68] sm:$0xff] %v715
        %732 = vst [vmem:[%s244 + $0x70] sm:$0xff] %v716
        %733 = vst [vmem:[%s244 + $0x78] sm:$0xff] %v717
      $region40: #{channel_attention.1} parent=31 // pred_fallthru
        _
      %p734 = scmp.lt.s32.totalorder %s18, 3
      %s735 = scalar_select %p734, %s18, 3
      %s736 = smul.addr %s735, 16
      %s737 = smul.addr %s736, 8
      %s738 = scalar_lea.vmem %s3, %s737
      // Predicated region
      $region41: #{channel_attention.1} parent=31 // pred_check
        %p739 = pneg %p126
      $region42: #{channel_attention.1} parent=31 // pred_check_branch
        %741 = sbr.rel (%p739) target = $region44
      $region43: #{channel_attention.1} parent=31 // pred_region
        _
      $region44: #{channel_attention.1} parent=31 // pred_fallthru
        _
    $region32: #{channel_attention.1} parent=5 // pred_fallthru
      _
    %p742 = scmp.le.s32.totalorder 2, %s9
    // Predicated region
    $region45: #{channel_attention.1} parent=5 // pred_check
      %p743 = pneg %p742
    $region46: #{channel_attention.1} parent=5 // pred_check_branch
      %745 = sbr.rel (%p743) target = $region48
    $region47: #{channel_attention.1} parent=5 // pred_region
      %s746 = ssub.s32 %s9, 2
      // Predicated region
      $region49: #{channel_attention.1} parent=47 // pred_check
        %p747 = pneg %p132
      $region50: #{channel_attention.1} parent=47 // pred_check_branch
        %749 = sbr.rel (%p747) target = $region52
      $region51: #{channel_attention.1} parent=47 // pred_region
        %p750 = scmp.lt.s32.totalorder %s20, 3
        %s751 = scalar_select %p750, %s20, 3
        %s752 = smul.addr %s751, 16
        %s753 = smul.addr %s752, 8
        %s754 = scalar_lea.vmem %s3, %s753
      $region52: #{channel_attention.1} parent=47 // pred_fallthru
        _
    $region48: #{channel_attention.1} parent=5 // pred_fallthru
      _
  $region6: #{channel_attention.1} parent=0 // loop_footer
    %s13 = sadd.s32 1, %s9
  $region7: #{channel_attention.1} parent=0 // loop_footer_branch
    %8 = sbr.rel target = $region3
  $region8: #{channel_attention.1} parent=0 // loop_exit
    _

</llo_original>
